<compile_context>
chip_gen: v7x
topology: tpu7x:2x2x1
jax: 0.10.0
libtpu: 0.0.40
codegen_flags: <defaults>
</compile_context>

<pallas_src>
import functools

import jax
import jax.numpy as jnp
from jax.experimental import pallas as pl
from jax.experimental.pallas import tpu as pltpu


def _round_up(x, m):
    return (x + m - 1) // m * m


def _layernorm_kernel(x_ref, g_ref, b_ref, o_ref, *, eps):
    x = x_ref[...].astype(jnp.float32)                    # (rows, D)
    mean = jnp.mean(x, axis=-1, keepdims=True)            # lane reduction (XLU)
    xc = x - mean
    var = jnp.mean(xc * xc, axis=-1, keepdims=True)       # biased, like PyTorch
    inv = jax.lax.rsqrt(var + eps)                        # EUP transcendental
    y = xc * inv * g_ref[...] + b_ref[...]                # (1, D) broadcasts
    o_ref[...] = y.astype(o_ref.dtype)


def layer_norm_pallas(x, gamma, beta, *, eps=1e-5):
    """LayerNorm over the last dim of x (any leading shape) via Pallas."""
    orig_shape = x.shape
    D = orig_shape[-1]
    x2 = x.reshape(-1, D)
    R = x2.shape[0]

    # Fat row blocks (sublane multiple of 8, capped at 256 rows); aim for at
    # least 2 blocks so a v7x chip can shard the "parallel" axis over its 2 TCs.
    block_rows = min(256, _round_up(max(R // 2, 8), 8))
    Rp = _round_up(R, block_rows)
    if Rp != R:
        x2 = jnp.pad(x2, ((0, Rp - R), (0, 0)), constant_values=1.0)

    g2 = gamma.reshape(1, D).astype(jnp.float32)
    b2 = beta.reshape(1, D).astype(jnp.float32)

    out = pl.pallas_call(
        functools.partial(_layernorm_kernel, eps=eps),
        out_shape=jax.ShapeDtypeStruct((Rp, D), x.dtype),
        grid=(Rp // block_rows,),
        in_specs=[
            pl.BlockSpec((block_rows, D), lambda i: (i, 0)),
            pl.BlockSpec((1, D), lambda i: (0, 0)),
            pl.BlockSpec((1, D), lambda i: (0, 0)),
        ],
        out_specs=pl.BlockSpec((block_rows, D), lambda i: (i, 0)),
        compiler_params=pltpu.CompilerParams(
            dimension_semantics=("parallel",)),
    )(x2, g2, b2)

    if Rp != R:
        out = out[:R]
    return out.reshape(orig_shape)


def pre_norm(x, gamma, beta, fn, *, eps=1e-5, **kwargs):
    """PreNorm.forward: fn(LayerNorm(x), **kwargs)."""
    # TODO(synk): `fn` is an arbitrary wrapped sub-module in the PyTorch spec;
    # here it is applied as a plain JAX callable on the Pallas-normalized
    # activations. When `fn` is known (e.g. a Linear / attention projection)
    # it should be fused into the same pallas_call so the normalized
    # intermediate never leaves VMEM.
    return fn(layer_norm_pallas(x, gamma, beta, eps=eps), **kwargs)


if __name__ == "__main__":
    key = jax.random.PRNGKey(0)
    B, S, D = 2, 8, 32
    k_x, k_g, k_b, k_w, k_wb = jax.random.split(key, 5)

    x = jax.random.normal(k_x, (B, S, D), jnp.float32)
    gamma = 1.0 + 0.1 * jax.random.normal(k_g, (D,), jnp.float32)
    beta = 0.1 * jax.random.normal(k_b, (D,), jnp.float32)

    # Example `fn`: a small linear layer (what PreNorm typically wraps).
    w = jax.random.normal(k_w, (D, D), jnp.float32) * (D ** -0.5)
    wb = 0.01 * jax.random.normal(k_wb, (D,), jnp.float32)
    fn = lambda y: y @ w + wb

    out = jax.jit(lambda xx: pre_norm(xx, gamma, beta, fn))(x)
    jax.block_until_ready(out)

    # Pure-JAX reference for the same forward (LayerNorm -> linear).
    mean = jnp.mean(x, axis=-1, keepdims=True)
    var = jnp.mean((x - mean) ** 2, axis=-1, keepdims=True)
    ref = ((x - mean) * jax.lax.rsqrt(var + 1e-5) * gamma + beta) @ w + wb

    assert out.shape == (B, S, D), out.shape
    assert jnp.allclose(out, ref, atol=1e-3, rtol=1e-3), float(
        jnp.max(jnp.abs(out - ref)))
    print("KERNEL_OK")
</pallas_src>

<mosaic_0001>
module attributes {stable_mosaic.version = 11 : i64} {
  func.func @_layernorm_kernel(%arg0: i32, %arg1: memref<8x32xf32, #tpu.memory_space<vmem>>, %arg2: memref<1x32xf32, #tpu.memory_space<vmem>>, %arg3: memref<1x32xf32, #tpu.memory_space<vmem>>, %arg4: memref<8x32xf32, #tpu.memory_space<vmem>>) attributes {dimension_semantics = [#tpu.dimension_semantics<parallel>], iteration_bounds = array<i64: 2>, scalar_prefetch = 0 : i64, scratch_operands = 0 : i64, tpu.core_type = #tpu.core_type<tc>, window_params = [{transform_indices = @transform_0, window_bounds = array<i64: 8, 32>}, {pipeline_mode = #tpu.pipeline_mode<synchronous>, transform_indices = @transform_1, window_bounds = array<i64: 1, 32>}, {pipeline_mode = #tpu.pipeline_mode<synchronous>, transform_indices = @transform_2, window_bounds = array<i64: 1, 32>}, {transform_indices = @transform_3, window_bounds = array<i64: 8, 32>}]} {
    %c0 = arith.constant 0 : index
    %c0_0 = arith.constant 0 : index
    %0 = vector.load %arg1[%c0, %c0_0] : memref<8x32xf32, #tpu.memory_space<vmem>>, vector<8x32xf32>
    %cst = arith.constant dense<0.000000e+00> : vector<8xf32>
    %1 = vector.multi_reduction <add>, %0, %cst [1] : vector<8x32xf32> to vector<8xf32>
    %2 = vector.shape_cast %1 : vector<8xf32> to vector<8x1xf32>
    %cst_1 = arith.constant 3.200000e+01 : f32
    %3 = vector.broadcast %cst_1 : f32 to vector<8x1xf32>
    %4 = arith.divf %2, %3 : vector<8x1xf32>
    %5 = vector.broadcast %4 : vector<8x1xf32> to vector<8x32xf32>
    %6 = arith.subf %0, %5 : vector<8x32xf32>
    %7 = arith.mulf %6, %6 : vector<8x32xf32>
    %cst_2 = arith.constant dense<0.000000e+00> : vector<8xf32>
    %8 = vector.multi_reduction <add>, %7, %cst_2 [1] : vector<8x32xf32> to vector<8xf32>
    %9 = vector.shape_cast %8 : vector<8xf32> to vector<8x1xf32>
    %cst_3 = arith.constant 3.200000e+01 : f32
    %10 = vector.broadcast %cst_3 : f32 to vector<8x1xf32>
    %11 = arith.divf %9, %10 : vector<8x1xf32>
    %cst_4 = arith.constant 9.99999974E-6 : f32
    %12 = vector.broadcast %cst_4 : f32 to vector<8x1xf32>
    %13 = arith.addf %11, %12 : vector<8x1xf32>
    %14 = math.rsqrt %13 : vector<8x1xf32>
    %15 = vector.broadcast %14 : vector<8x1xf32> to vector<8x32xf32>
    %16 = arith.mulf %6, %15 : vector<8x32xf32>
    %c0_5 = arith.constant 0 : index
    %c0_6 = arith.constant 0 : index
    %17 = vector.load %arg2[%c0_5, %c0_6] : memref<1x32xf32, #tpu.memory_space<vmem>>, vector<1x32xf32>
    %18 = vector.broadcast %17 : vector<1x32xf32> to vector<8x32xf32>
    %19 = arith.mulf %16, %18 : vector<8x32xf32>
    %c0_7 = arith.constant 0 : index
    %c0_8 = arith.constant 0 : index
    %20 = vector.load %arg3[%c0_7, %c0_8] : memref<1x32xf32, #tpu.memory_space<vmem>>, vector<1x32xf32>
    %21 = vector.broadcast %20 : vector<1x32xf32> to vector<8x32xf32>
    %22 = arith.addf %19, %21 : vector<8x32xf32>
    %c0_9 = arith.constant 0 : index
    %c0_10 = arith.constant 0 : index
    %23 = vector.load %arg4[%c0_9, %c0_10] : memref<8x32xf32, #tpu.memory_space<vmem>>, vector<8x32xf32>
    tpu.vector_store %arg4[%c0_9, %c0_10], %22 {strides = array<i32>} : memref<8x32xf32, #tpu.memory_space<vmem>>, vector<8x32xf32>,
    return
  }
  func.func @transform_0(%arg0: i32) -> (i32, i32) {
    %c0_i32 = arith.constant 0 : i32
    %c0_i32_0 = arith.constant 0 : i32
    return %arg0, %c0_i32 : i32, i32
  }
  func.func @transform_1(%arg0: i32) -> (i32, i32) {
    %c0_i32 = arith.constant 0 : i32
    %c0_i32_0 = arith.constant 0 : i32
    %c0_i32_1 = arith.constant 0 : i32
    return %c0_i32, %c0_i32_0 : i32, i32
  }
  func.func @transform_2(%arg0: i32) -> (i32, i32) {
    %c0_i32 = arith.constant 0 : i32
    %c0_i32_0 = arith.constant 0 : i32
    %c0_i32_1 = arith.constant 0 : i32
    return %c0_i32, %c0_i32_0 : i32, i32
  }
  func.func @transform_3(%arg0: i32) -> (i32, i32) {
    %c0_i32 = arith.constant 0 : i32
    %c0_i32_0 = arith.constant 0 : i32
    return %arg0, %c0_i32 : i32, i32
  }
}

</mosaic_0001>

<llo_original>
// kernel: _lambda_.1
$region0: #{_lambda_.1}
  #allocation0 [shape = 'u32[]', space=smem, size = 0x4, offset = 0x4, fixed_abs, tag = 'smem constant byte address 0x4 - core index']
  #allocation1 [shape = 'u32[144,128]{1,0:T(1,128)}', space=vmem, size = 0x12000, scoped, tag = 'internal scratch']
  %s0 = inlined_call_operand.hbm [shape: f32[16,32], index: 0, kind: input, shape index: {}]
  %s1 = inlined_call_operand.vmem [shape: f32[1,32], index: 1, kind: input, shape index: {}]
  %s2 = inlined_call_operand.vmem [shape: f32[1,32], index: 2, kind: input, shape index: {}]
  %s3 = inlined_call_operand.vmem [shape: f32[16,32], index: 3, kind: output, shape index: {}]
  %s4 = sld [smem:[#allocation0]]
  $region49: #{_lambda_.1} parent=0
    _
  %s6 = ssub.s32 1, %s4
  %s7 = scalar_select 0, %s6, %s4
  $region1: #{_lambda_.1} parent=0
    #allocation2 [shape = 'u8[8192]{0}', space=vmem, size = 0x2000, scoped, tag = 'input window, operand 0']
    #allocation3 [shape = 's32[2]{0}', space=sflag, size = 0x8, scoped, tag = 'scoped memory for _lambda_.1']
    %8 = vsyncpa [#allocation3], 0
    %s9 = scalar_lea.sflag [#allocation3], 1
    %10 = vsyncpa %s9, 0
    loop: start=0, step=1, limit=4
    $region2: #{_lambda_.1} parent=1 // loop_pre_header
      _
    $region3: #{_lambda_.1} parent=1 // loop_header
      %s12 = sphi 0, %s16
      %p13 = scmp.ge.s32.totalorder %s12, 4
      %s22 = sphi 0, %s24
      %s25 = sphi 0, %s22
      %s26 = sphi 0, %s25
      %s42 = sphi 0, %s26
      %s46 = sphi 0, %s46
      %s48 = sphi 0, %s46
      %s49 = sphi 0, %s48
      %s63 = sphi 0, %s49
      %s67 = sphi 0, %s67
      %s69 = sphi 0, %s67
      %s70 = sphi 0, %s69
      %s84 = sphi 0, %s70
      %s90 = sphi 0, %s92
      %s93 = sphi 0, %s90
      %s94 = sphi 0, %s93
      %s110 = sphi 0, %s94
    $region4: #{_lambda_.1} parent=1 // loop_header_branch
      %15 = sbr.rel (%p13) target = $region8
    $region5: #{_lambda_.1} parent=1 // loop_body
      %s17 = ssub.s32 %s12, 1
      %s18 = ssub.s32 %s12, 2
      %s19 = sadd.s32 %s12, 1
      %s20 = ssub.s32 %s12, %s19
      %p21 = scmp.eq.s32.totalorder %s20, 0
      %s23 = sadd.s32 %s22, 1
      %s24 = scalar_select %p21, %s22, %s23
      %p27 = pneg %p21
      %p28 = scmp.eq.s32.totalorder %s12, 1
      %p29 = por %p27, %p28
      %p30 = scmp.ne.s32.totalorder %s22, %s25
      %p31 = scmp.eq.s32.totalorder %s12, 0
      %p32 = por %p30, %p31
      %p33 = scmp.ne.s32.totalorder %s22, %s25
      %p34 = scmp.eq.s32.totalorder %s17, 1
      %p35 = por %p33, %p34
      %p36 = scmp.ne.s32.totalorder %s25, %s26
      %p37 = scmp.eq.s32.totalorder %s17, 0
      %p38 = por %p36, %p37
      %p39 = scmp.ne.s32.totalorder %s25, %s26
      %p40 = scmp.eq.s32.totalorder %s18, 1
      %p41 = por %p39, %p40
      %p43 = scmp.ne.s32.totalorder %s26, %s42
      %p44 = scmp.eq.s32.totalorder %s18, 0
      %p45 = por %p43, %p44
      %s47 = sadd.s32 %s46, 1
      %p50 = scmp.eq.s32.totalorder %s12, 1
      %p51 = scmp.ne.s32.totalorder %s46, %s48
      %p52 = scmp.eq.s32.totalorder %s12, 0
      %p53 = por %p51, %p52
      %p54 = scmp.ne.s32.totalorder %s46, %s48
      %p55 = scmp.eq.s32.totalorder %s17, 1
      %p56 = por %p54, %p55
      %p57 = scmp.ne.s32.totalorder %s48, %s49
      %p58 = scmp.eq.s32.totalorder %s17, 0
      %p59 = por %p57, %p58
      %p60 = scmp.ne.s32.totalorder %s48, %s49
      %p61 = scmp.eq.s32.totalorder %s18, 1
      %p62 = por %p60, %p61
      %p64 = scmp.ne.s32.totalorder %s49, %s63
      %p65 = scmp.eq.s32.totalorder %s18, 0
      %p66 = por %p64, %p65
      %s68 = sadd.s32 %s67, 1
      %p71 = scmp.eq.s32.totalorder %s12, 1
      %p72 = scmp.ne.s32.totalorder %s67, %s69
      %p73 = scmp.eq.s32.totalorder %s12, 0
      %p74 = por %p72, %p73
      %p75 = scmp.ne.s32.totalorder %s67, %s69
      %p76 = scmp.eq.s32.totalorder %s17, 1
      %p77 = por %p75, %p76
      %p78 = scmp.ne.s32.totalorder %s69, %s70
      %p79 = scmp.eq.s32.totalorder %s17, 0
      %p80 = por %p78, %p79
      %p81 = scmp.ne.s32.totalorder %s69, %s70
      %p82 = scmp.eq.s32.totalorder %s18, 1
      %p83 = por %p81, %p82
      %p85 = scmp.ne.s32.totalorder %s70, %s84
      %p86 = scmp.eq.s32.totalorder %s18, 0
      %p87 = por %p85, %p86
      %s88 = ssub.s32 %s12, %s19
      %p89 = scmp.eq.s32.totalorder %s88, 0
      %s91 = sadd.s32 %s90, 1
      %s92 = scalar_select %p89, %s90, %s91
      %p95 = pneg %p89
      %p96 = scmp.eq.s32.totalorder %s12, 1
      %p97 = por %p95, %p96
      %p98 = scmp.ne.s32.totalorder %s90, %s93
      %p99 = scmp.eq.s32.totalorder %s12, 0
      %p100 = por %p98, %p99
      %p101 = scmp.ne.s32.totalorder %s90, %s93
      %p102 = scmp.eq.s32.totalorder %s17, 1
      %p103 = por %p101, %p102
      %p104 = scmp.ne.s32.totalorder %s93, %s94
      %p105 = scmp.eq.s32.totalorder %s17, 0
      %p106 = por %p104, %p105
      %p107 = scmp.ne.s32.totalorder %s93, %s94
      %p108 = scmp.eq.s32.totalorder %s18, 1
      %p109 = por %p107, %p108
      %p111 = scmp.ne.s32.totalorder %s94, %s110
      %p112 = scmp.eq.s32.totalorder %s18, 0
      %p113 = por %p111, %p112
      %p114 = scmp.le.s32.totalorder 1, %s12
      %p115 = scmp.lt.s32.totalorder %s12, 3
      %p116 = pnand %p114, %p115
      %p117 = pneg %p116
      // Predicated region
      $region9: #{_lambda_.1} parent=5 // pred_check
        _
      $region10: #{_lambda_.1} parent=5 // pred_check_branch
        %119 = sbr.rel (%p116) target = $region12
      $region11: #{_lambda_.1} parent=5 // pred_region
        %s120 = ssub.s32 %s12, 1
        // Predicated region
        $region13: #{_lambda_.1} parent=11 // pred_check
          %p121 = pneg %p59
        $region14: #{_lambda_.1} parent=11 // pred_check_branch
          %123 = sbr.rel (%p121) target = $region16
        $region15: #{_lambda_.1} parent=11 // pred_region
          _
        $region16: #{_lambda_.1} parent=11 // pred_fallthru
          _
        // Predicated region
        $region17: #{_lambda_.1} parent=11 // pred_check
          %p124 = pneg %p80
        $region18: #{_lambda_.1} parent=11 // pred_check_branch
          %126 = sbr.rel (%p124) target = $region20
        $region19: #{_lambda_.1} parent=11 // pred_region
          _
        $region20: #{_lambda_.1} parent=11 // pred_fallthru
          _
      $region12: #{_lambda_.1} parent=5 // pred_fallthru
        _
      %p127 = scmp.lt.s32.totalorder %s12, 2
      // Predicated region
      $region21: #{_lambda_.1} parent=5 // pred_check
        %p128 = pneg %p127
      $region22: #{_lambda_.1} parent=5 // pred_check_branch
        %130 = sbr.rel (%p128) target = $region24
      $region23: #{_lambda_.1} parent=5 // pred_region
        // Predicated region
        $region25: #{_lambda_.1} parent=23 // pred_check
          %p131 = pneg %p32
        $region26: #{_lambda_.1} parent=23 // pred_check_branch
          %133 = sbr.rel (%p131) target = $region28
        $region27: #{_lambda_.1} parent=23 // pred_region
          %s134 = sand.u32 %s22, 1
          %s135 = scalar_lea.sflag [#allocation3], %s134
          %s136 = sand.u32 %s22, 1
          %s137 = smul.addr %s136, 8
          %s138 = scalar_lea.vmem [#allocation2], %s137
          %s140 = ssub.s32 128, 128
          %141 = vsyncadd %s135, %s140
          %s142 = smul.addr %s12, 128
          %s143 = scalar_lea.hbm %s0, %s142
          %s145 = sshll.u32 %s138, 4
          %s146 = int_to_ptr.vmem [resolvable:$true] %s145
          %148 = dma.hbm_to_vmem [thread:$0]  %s143, 128, %s146, %s135
        $region28: #{_lambda_.1} parent=23 // pred_fallthru
          _
      $region24: #{_lambda_.1} parent=5 // pred_fallthru
        _
      %p149 = scmp.le.s32.totalorder 1, %s12
      %p150 = scmp.lt.s32.totalorder %s12, 3
      %p151 = pnand %p149, %p150
      %p152 = pneg %p151
      // Predicated region
      $region29: #{_lambda_.1} parent=5 // pred_check
        _
      $region30: #{_lambda_.1} parent=5 // pred_check_branch
        %154 = sbr.rel (%p151) target = $region32
      $region31: #{_lambda_.1} parent=5 // pred_region
        %s155 = ssub.s32 %s12, 1
        %s156 = sand.u32 %s25, 1
        %s157 = scalar_lea.sflag [#allocation3], %s156
        %s158 = sand.u32 %s25, 1
        %s159 = smul.addr %s158, 8
        %s160 = scalar_lea.vmem [#allocation2], %s159
        // Predicated region
        $region33: #{_lambda_.1} parent=31 // pred_check
          %p161 = pneg %p38
        $region34: #{_lambda_.1} parent=31 // pred_check_branch
          %163 = sbr.rel (%p161) target = $region36
        $region35: #{_lambda_.1} parent=31 // pred_region
          %164 = dma.done %s157, 128
        $region36: #{_lambda_.1} parent=31 // pred_fallthru
          _
        %s165 = sand.u32 %s25, 1
        %s166 = scalar_lea.sflag [#allocation3], %s165
        %s167 = sand.u32 %s25, 1
        %s168 = smul.addr %s167, 8
        %s169 = scalar_lea.vmem [#allocation2], %s168
        %p170 = pneg %p38
        %p171 = pneg %p35
        %p172 = pneg %p59
        %p173 = pneg %p56
        %p174 = pneg %p80
        %p175 = pneg %p77
        %p176 = pneg %p106
        %p177 = pneg %p103
        %p178 = scmp.lt.s32.totalorder %s17, 1
        %s179 = scalar_select %p178, %s17, 1
        %s180 = smul.addr %s179, 8
        %s181 = scalar_lea.vmem %s3, %s180
        %p182 = scmp.lt.s32.totalorder %s17, 1
        %s183 = scalar_select %p182, %s17, 1
        %s184 = smul.addr %s183, 8
        %s185 = scalar_lea.vmem %s3, %s184
        %v186 = vld [vmem:[%s160] sm:$0xff]
        %vm187 = vcmask 261120
        %v188 = vsel %vm187, %v186, 0.0
        %189 = vadd.xlane.f32.xlu0 %v188
        %v190 = vpop.xlane.xlu0 %189
        %v191 = vrcp.pop 32.0
        %v192 = vmul.f32 %v190, %v191
        %v193 = vsub.f32 %v186, %v192
        %v194 = vmul.f32 %v193, %v193
        %v195 = vsel %vm187, %v194, 0.0
        %196 = vadd.xlane.f32.xlu0 %v195
        %v197 = vpop.xlane.xlu0 %196
        %v198 = vmul.f32 %v197, %v191
        %v199 = vadd.f32 %v198, 1e-05
        %v200 = vrsqrt.pop %v199
        %v201 = vmul.f32 %v193, %v200
        %v202 = vld [vmem:[%s1] sm:$0x1]
        %v204 = vlaneseq
        %v205 = vshrl.u32 %v204, 7
        %v206 = vsub.s32 0, %v205
        %v207 = vrot.slane %v202, %v206
        %v209 = vmul.f32 %v201, %v207
        %v210 = vld [vmem:[%s2] sm:$0x1]
        %v212 = vlaneseq
        %v213 = vshrl.u32 %v212, 7
        %v214 = vsub.s32 0, %v213
        %v215 = vrot.slane %v210, %v214
        %v217 = vadd.f32 %v209, %v215
        %218 = vst.msk [vmem:[%s185] sm:$0xff] %vm187, %v217
        %p219 = scmp.lt.s32.totalorder %s17, 1
        %s220 = scalar_select %p219, %s17, 1
        %s221 = smul.addr %s220, 8
        %s222 = scalar_lea.vmem %s3, %s221
        // Predicated region
        $region37: #{_lambda_.1} parent=31 // pred_check
          %p223 = pneg %p103
        $region38: #{_lambda_.1} parent=31 // pred_check_branch
          %225 = sbr.rel (%p223) target = $region40
        $region39: #{_lambda_.1} parent=31 // pred_region
          _
        $region40: #{_lambda_.1} parent=31 // pred_fallthru
          _
      $region32: #{_lambda_.1} parent=5 // pred_fallthru
        _
      %p226 = scmp.le.s32.totalorder 2, %s12
      // Predicated region
      $region41: #{_lambda_.1} parent=5 // pred_check
        %p227 = pneg %p226
      $region42: #{_lambda_.1} parent=5 // pred_check_branch
        %229 = sbr.rel (%p227) target = $region44
      $region43: #{_lambda_.1} parent=5 // pred_region
        %s230 = ssub.s32 %s12, 2
        // Predicated region
        $region45: #{_lambda_.1} parent=43 // pred_check
          %p231 = pneg %p109
        $region46: #{_lambda_.1} parent=43 // pred_check_branch
          %233 = sbr.rel (%p231) target = $region48
        $region47: #{_lambda_.1} parent=43 // pred_region
          %p234 = scmp.lt.s32.totalorder %s18, 1
          %s235 = scalar_select %p234, %s18, 1
          %s236 = smul.addr %s235, 8
          %s237 = scalar_lea.vmem %s3, %s236
        $region48: #{_lambda_.1} parent=43 // pred_fallthru
          _
      $region44: #{_lambda_.1} parent=5 // pred_fallthru
        _
    $region6: #{_lambda_.1} parent=1 // loop_footer
      %s16 = sadd.s32 1, %s12
    $region7: #{_lambda_.1} parent=1 // loop_footer_branch
      %11 = sbr.rel target = $region3
    $region8: #{_lambda_.1} parent=1 // loop_exit
      _
    %238 = vsyncpa [#allocation3], 1
    %s239 = scalar_lea.sflag [#allocation3], 1
    %240 = vsyncpa %s239, 1

</llo_original>
